<compile_context>
chip_gen: v7x
topology: tpu7x:2x2x1
jax: 0.10.0
libtpu: 0.0.40
codegen_flags: <defaults>
</compile_context>

<pallas_src>
import functools

import jax
import jax.numpy as jnp
from jax.experimental import pallas as pl
from jax.experimental.pallas import tpu as pltpu

_LANE = 128              # lane (last-dim) granularity of a vreg
_MIN_ROW_BLOCKS = 4      # aim for a few row blocks: megacore + pipeline fill


def _round_up(a, m):
    return (a + m - 1) // m * m


def _cdiv(a, b):
    return (a + b - 1) // b


def _sublane(itemsize):
    # 8 rows for 4-byte dtypes, 16 for 2-byte, 32 for 1-byte (sublane packing).
    return max(8, 32 // max(1, itemsize))


def _default_block_bytes():
    """Per-input-block VMEM budget derived from the device generation.

    ~vmem/8 keeps the double-buffered input plus output and slack comfortably
    inside every generation's VMEM (v5e 128 MiB phys / 16 MiB default scoped,
    v6e 128 MiB, v7x only 64 MiB); the scoped limit is raised explicitly below.
    """
    try:
        vmem = int(pltpu.get_tpu_info().vmem_capacity_bytes)
    except Exception:
        return 8 << 20
    return int(min(12 << 20, max(4 << 20, vmem // 8)))


def _pick_tiles(R, HW, itemsize, max_block_bytes):
    """Choose (rtile, n_r, hwt, n_hw) for input blocks of shape (rtile, hwt)."""
    sub = _sublane(itemsize)
    hw_pad = _round_up(HW, _LANE)
    max_elems = max(max_block_bytes // itemsize, sub * _LANE)
    r_full = _round_up(R, sub)

    if hw_pad * sub <= max_elems:
        # Whole pixel extent fits in one lane chunk -> single reduction step
        # per output block; block last dim == HW (full extent, no masking).
        hwt, n_hw = HW, 1
        row_cap = max(((max_elems // hw_pad) // sub) * sub, sub)
        rtile = min(row_cap, r_full)
        # Prefer a handful of row blocks so v7x's two TensorCores both get
        # work and the 2-deep pipeline has something to overlap.
        want = min(_MIN_ROW_BLOCKS, max(1, r_full // sub))
        if want > 1:
            rtile = min(rtile, _round_up(_cdiv(r_full, want), sub))
        n_r = _cdiv(R, rtile)
    else:
        # Pixel extent too large for one chunk: one sublane group of rows per
        # block, chunk pixels along the innermost ("arbitrary") grid axis.
        rtile = sub
        n_r = _cdiv(R, rtile)
        hw_cap = max(((max_elems // rtile) // _LANE) * _LANE, _LANE)
        hwt = min(hw_cap, hw_pad)
        n_hw = _cdiv(HW, hwt)
    return rtile, n_r, hwt, n_hw


def _row_mean_kernel(x_ref, o_ref, *, hw, hwt, inv_hw, mask_last, single_chunk):
    """Sum rows of a (rtile, hwt) tile; accumulate across the pixel grid axis.

    x_ref: (rtile, hwt) input tile, pixels dense on the lane axis.
    o_ref: (rtile, 1) f32 output block, resident across the pixel-chunk axis.
    """
    hi = pl.program_id(1)
    x = x_ref[...].astype(jnp.float32)       # f32 accumulation for bf16/int8
    if mask_last:
        # HW is not a multiple of hwt: lanes past the array end hold undefined
        # VMEM contents on the edge chunk -> zero them before reducing.  The
        # predicate is trivially true on non-edge chunks (VPU ops are free
        # here; the kernel is DMA-bound).
        lane = jax.lax.broadcasted_iota(jnp.int32, x.shape, 1)
        x = jnp.where(hi * hwt + lane < hw, x, 0.0)
    psum = jnp.sum(x, axis=-1, keepdims=True)

    if single_chunk:
        # Fast path: one pixel chunk -> write the mean directly.
        o_ref[...] = psum * inv_hw
    else:
        @pl.when(hi == 0)
        def _init():
            o_ref[...] = jnp.zeros_like(o_ref)

        o_ref[...] += psum

        @pl.when(hi == pl.num_programs(1) - 1)
        def _finalize():
            o_ref[...] = o_ref[...] * inv_hw


def _spatial_mean_pallas(x, *, max_block_bytes):
    B, C, T, H, W = x.shape
    HW = H * W
    R = B * C * T
    itemsize = jnp.dtype(x.dtype).itemsize

    rtile, n_r, hwt, n_hw = _pick_tiles(R, HW, itemsize, max_block_bytes)
    mask_last = (HW % hwt) != 0

    # Free, contiguous reshape — NO padding copy of the input in HBM.
    xf = x.reshape(R, HW)

    kernel = functools.partial(
        _row_mean_kernel, hw=HW, hwt=hwt, inv_hw=1.0 / float(HW),
        mask_last=mask_last, single_chunk=(n_hw == 1))

    # Scoped-VMEM limit derived from the actual tiles (double-buffered input
    # + output + slack) instead of a hard-coded constant.
    in_blk = rtile * _round_up(hwt, _LANE) * itemsize
    out_blk = rtile * _LANE * 4
    vmem_limit = int(max(2 * in_blk + 2 * out_blk + (2 << 20), 8 << 20))

    sums = pl.pallas_call(
        kernel,
        out_shape=jax.ShapeDtypeStruct((R, 1), jnp.float32),
        grid_spec=pltpu.PrefetchScalarGridSpec(
            num_scalar_prefetch=0,
            grid=(n_r, n_hw),                 # reduction (pixel) axis last
            in_specs=[pl.BlockSpec((rtile, hwt), lambda ri, hi: (ri, hi))],
            # Same output block across the pixel axis -> resident accumulator.
            out_specs=pl.BlockSpec((rtile, 1), lambda ri, hi: (ri, 0)),
        ),
        compiler_params=pltpu.CompilerParams(
            dimension_semantics=("parallel", "arbitrary"),
            vmem_limit_bytes=vmem_limit,
        ),
    )(xf)

    mean_bct = sums.reshape(B, C, T)
    # Glue: (B, C, T) -> (B, T, C); output bytes are 1/(H*W) of the input, so
    # this wrapper transpose is essentially free.
    return jnp.transpose(mean_bct, (0, 2, 1)).astype(x.dtype)


def ica_forward(x, *, use_kernel=None, max_block_bytes=None):
    """Pallas implementation of ICA.forward.

    Args:
      x: (B, C, T, H, W) array (C == 3 BGR in the reference model).
      use_kernel: force (True) / bypass (False) the Pallas kernel; None = auto
        dispatch based on input size.
      max_block_bytes: per-input-block VMEM budget; None -> per-generation
        default (~8 MiB v7x, ~12 MiB v5e/v6e).
    Returns:
      (B, T, C): the spatial mean of the (0,2,3,4,1)-permuted input — exactly
      what the PyTorch forward returns.
    """
    # TODO(synk): the PyTorch forward also builds BGRNorm via an external
    # `detrend` and runs JADE-ICA (torch.linalg.eigh, pinverse, data-dependent
    # Givens sweeps); those results never reach the returned tensor, so they
    # are intentionally omitted here.
    if max_block_bytes is None:
        max_block_bytes = _default_block_bytes()
    if use_kernel is None:
        # For tiny clips the pallas_call launch / per-grid-step overhead
        # dominates; let XLA's fused reduce handle them.
        use_kernel = x.size * jnp.dtype(x.dtype).itemsize >= (4 << 20)
    if not use_kernel:
        return jnp.mean(jnp.transpose(x, (0, 2, 3, 4, 1)), axis=(2, 3))
    return _spatial_mean_pallas(x, max_block_bytes=max_block_bytes)


if __name__ == "__main__":
    key = jax.random.PRNGKey(0)
    k1, k2, k3 = jax.random.split(key, 3)

    def ref_mean(x):
        xf = jnp.transpose(x, (0, 2, 3, 4, 1)).astype(jnp.float32)
        return jnp.mean(xf, axis=(2, 3))

    # Case 1: aligned shapes — single pixel chunk, several parallel row blocks.
    x1 = jax.random.normal(k1, (2, 3, 8, 16, 16), dtype=jnp.float32)
    out1 = jax.block_until_ready(ica_forward(x1, use_kernel=True))
    assert out1.shape == (2, 8, 3), out1.shape
    assert out1.dtype == x1.dtype, out1.dtype
    assert jnp.allclose(out1.astype(jnp.float32), ref_mean(x1),
                        atol=1e-5, rtol=1e-5), "mismatch (aligned)"

    # Case 2: unaligned H*W (13*13=169) + tiny block budget — exercises the
    # multi-chunk pixel axis, in-kernel lane masking and edge row blocks.
    x2 = jax.random.normal(k2, (2, 3, 10, 13, 13), dtype=jnp.float32)
    out2 = jax.block_until_ready(
        ica_forward(x2, use_kernel=True, max_block_bytes=4 * 1024))
    assert out2.shape == (2, 10, 3), out2.shape
    assert jnp.allclose(out2.astype(jnp.float32), ref_mean(x2),
                        atol=1e-5, rtol=1e-5), "mismatch (masked/tiled)"

    # Case 3: same unaligned input with the default budget — full-extent
    # (non-128-multiple) lane block, no masking path.
    out3 = jax.block_until_ready(ica_forward(x2, use_kernel=True))
    assert jnp.allclose(out3.astype(jnp.float32), ref_mean(x2),
                        atol=1e-5, rtol=1e-5), "mismatch (full-extent)"

    # Case 4: bf16 input — 16-row sublane granularity, f32 accumulation.
    x4 = jax.random.normal(k3, (1, 3, 12, 16, 16), dtype=jnp.bfloat16)
    out4 = jax.block_until_ready(ica_forward(x4, use_kernel=True))
    assert out4.shape == (1, 12, 3), out4.shape
    assert out4.dtype == jnp.bfloat16, out4.dtype
    assert jnp.allclose(out4.astype(jnp.float32), ref_mean(x4),
                        atol=2e-2, rtol=2e-2), "mismatch (bf16)"

    print("KERNEL_OK")
</pallas_src>

<mosaic_0001>
module attributes {stable_mosaic.version = 11 : i64} {
  func.func @_row_mean_kernel(%arg0: i32, %arg1: i32, %arg2: memref<16x256xf32, #tpu.memory_space<vmem>>, %arg3: memref<16x1xf32, #tpu.memory_space<vmem>>) attributes {dimension_semantics = [#tpu.dimension_semantics<parallel>, #tpu.dimension_semantics<arbitrary>], iteration_bounds = array<i64: 3, 1>, scalar_prefetch = 0 : i64, scratch_operands = 0 : i64, tpu.core_type = #tpu.core_type<tc>, window_params = [{transform_indices = @transform_0, window_bounds = array<i64: 16, 256>}, {transform_indices = @transform_1, window_bounds = array<i64: 16, 1>}]} {
    %c0 = arith.constant 0 : index
    %c0_0 = arith.constant 0 : index
    %0 = vector.load %arg2[%c0, %c0_0] : memref<16x256xf32, #tpu.memory_space<vmem>>, vector<16x256xf32>
    %cst = arith.constant dense<0.000000e+00> : vector<16xf32>
    %1 = vector.multi_reduction <add>, %0, %cst [1] : vector<16x256xf32> to vector<16xf32>
    %2 = vector.shape_cast %1 : vector<16xf32> to vector<16x1xf32>
    %cst_1 = arith.constant 3.906250e-03 : f32
    %3 = vector.broadcast %cst_1 : f32 to vector<16x1xf32>
    %4 = arith.mulf %2, %3 : vector<16x1xf32>
    %c0_2 = arith.constant 0 : index
    %c0_3 = arith.constant 0 : index
    %5 = vector.load %arg3[%c0_2, %c0_3] : memref<16x1xf32, #tpu.memory_space<vmem>>, vector<16x1xf32>
    tpu.vector_store %arg3[%c0_2, %c0_3], %4 {strides = array<i32>} : memref<16x1xf32, #tpu.memory_space<vmem>>, vector<16x1xf32>,
    return
  }
  func.func @transform_0(%arg0: i32, %arg1: i32) -> (i32, i32) {
    %c0_i32 = arith.constant 0 : i32
    return %arg0, %arg1 : i32, i32
  }
  func.func @transform_1(%arg0: i32, %arg1: i32) -> (i32, i32) {
    %c0_i32 = arith.constant 0 : i32
    %c0_i32_0 = arith.constant 0 : i32
    return %arg0, %c0_i32 : i32, i32
  }
}

</mosaic_0001>

<llo_original>
// kernel: tpu_custom_call.1
$region0: #{tpu_custom_call.1}
  #allocation0 [shape = 'u32[]', space=smem, size = 0x4, offset = 0x4, fixed_abs, tag = 'smem constant byte address 0x4 - core index']
  #allocation1 [shape = 'u32[144,128]{1,0:T(1,128)}', space=vmem, size = 0x12000, scoped, tag = 'internal scratch']
  %s0 = inlined_call_operand.hbm [shape: f32[48,256], index: 0, kind: input, shape index: {}]
  %s1 = inlined_call_operand.vmem [shape: f32[48,1], index: 1, kind: output, shape index: {}]
  %s2 = sld [smem:[#allocation0]]
  $region41: #{tpu_custom_call.1} parent=0
    _
  %s4 = ssub.s32 1, %s2
  %s5 = scalar_select 0, %s4, %s2
  $region1: #{tpu_custom_call.1} parent=0
    #allocation2 [shape = 'u8[32768]{0}', space=vmem, size = 0x8000, scoped, tag = 'input window, operand 0']
    #allocation3 [shape = 's32[2]{0}', space=sflag, size = 0x8, scoped, tag = 'scoped memory for tpu_custom_call.1']
    %6 = vsyncpa [#allocation3], 0
    %s7 = scalar_lea.sflag [#allocation3], 1
    %8 = vsyncpa %s7, 0
    loop: start=0, step=1, limit=5
    $region2: #{tpu_custom_call.1} parent=1 // loop_pre_header
      _
    $region3: #{tpu_custom_call.1} parent=1 // loop_header
      %s10 = sphi 0, %s14
      %p11 = scmp.ge.s32.totalorder %s10, 5
      %s17 = sphi 0, %s29
      %s18 = sphi 0, %s25
      %s19 = sphi 0, %s17
      %s20 = sphi 0, %s18
      %s21 = sphi 0, %s19
      %s22 = sphi 0, %s20
      %s34 = sphi 0, %s36
      %s37 = sphi 0, %s34
      %s38 = sphi 0, %s37
      %s54 = sphi 0, %s38
      %s60 = sphi 0, %s62
      %s63 = sphi 0, %s60
      %s64 = sphi 0, %s63
      %s80 = sphi 0, %s64
    $region4: #{tpu_custom_call.1} parent=1 // loop_header_branch
      %13 = sbr.rel (%p11) target = $region8
    $region5: #{tpu_custom_call.1} parent=1 // loop_body
      %s15 = ssub.s32 %s10, 1
      %s16 = ssub.s32 %s10, 2
      %s23 = sadd.s32 1, %s18
      %p24 = scmp.ge.s32.totalorder %s23, 1
      %s25 = scalar_select %p24, 0, %s23
      %s26 = sadd.s32 1, %s17
      %s27 = scalar_select %p24, %s26, %s17
      %p28 = scmp.ge.s32.totalorder %s27, 3
      %s29 = scalar_select %p28, 0, %s27
      %s30 = ssub.s32 %s17, %s29
      %s31 = ssub.s32 %s18, %s25
      %s32 = sor.u32 %s30, %s31
      %p33 = scmp.eq.s32.totalorder %s32, 0
      %s35 = sadd.s32 %s34, 1
      %s36 = scalar_select %p33, %s34, %s35
      %p39 = pneg %p33
      %p40 = scmp.eq.s32.totalorder %s10, 2
      %p41 = por %p39, %p40
      %p42 = scmp.ne.s32.totalorder %s34, %s37
      %p43 = scmp.eq.s32.totalorder %s10, 0
      %p44 = por %p42, %p43
      %p45 = scmp.ne.s32.totalorder %s34, %s37
      %p46 = scmp.eq.s32.totalorder %s15, 2
      %p47 = por %p45, %p46
      %p48 = scmp.ne.s32.totalorder %s37, %s38
      %p49 = scmp.eq.s32.totalorder %s15, 0
      %p50 = por %p48, %p49
      %p51 = scmp.ne.s32.totalorder %s37, %s38
      %p52 = scmp.eq.s32.totalorder %s16, 2
      %p53 = por %p51, %p52
      %p55 = scmp.ne.s32.totalorder %s38, %s54
      %p56 = scmp.eq.s32.totalorder %s16, 0
      %p57 = por %p55, %p56
      %s58 = ssub.s32 %s17, %s29
      %p59 = scmp.eq.s32.totalorder %s58, 0
      %s61 = sadd.s32 %s60, 1
      %s62 = scalar_select %p59, %s60, %s61
      %p65 = pneg %p59
      %p66 = scmp.eq.s32.totalorder %s10, 2
      %p67 = por %p65, %p66
      %p68 = scmp.ne.s32.totalorder %s60, %s63
      %p69 = scmp.eq.s32.totalorder %s10, 0
      %p70 = por %p68, %p69
      %p71 = scmp.ne.s32.totalorder %s60, %s63
      %p72 = scmp.eq.s32.totalorder %s15, 2
      %p73 = por %p71, %p72
      %p74 = scmp.ne.s32.totalorder %s63, %s64
      %p75 = scmp.eq.s32.totalorder %s15, 0
      %p76 = por %p74, %p75
      %p77 = scmp.ne.s32.totalorder %s63, %s64
      %p78 = scmp.eq.s32.totalorder %s16, 2
      %p79 = por %p77, %p78
      %p81 = scmp.ne.s32.totalorder %s64, %s80
      %p82 = scmp.eq.s32.totalorder %s16, 0
      %p83 = por %p81, %p82
      %p84 = scmp.le.s32.totalorder 1, %s10
      %p85 = scmp.lt.s32.totalorder %s10, 4
      %p86 = pnand %p84, %p85
      %p87 = pneg %p86
      // Predicated region
      $region9: #{tpu_custom_call.1} parent=5 // pred_check
        _
      $region10: #{tpu_custom_call.1} parent=5 // pred_check_branch
        %89 = sbr.rel (%p86) target = $region12
      $region11: #{tpu_custom_call.1} parent=5 // pred_region
        %s90 = ssub.s32 %s10, 1
      $region12: #{tpu_custom_call.1} parent=5 // pred_fallthru
        _
      %p91 = scmp.lt.s32.totalorder %s10, 3
      // Predicated region
      $region13: #{tpu_custom_call.1} parent=5 // pred_check
        %p92 = pneg %p91
      $region14: #{tpu_custom_call.1} parent=5 // pred_check_branch
        %94 = sbr.rel (%p92) target = $region16
      $region15: #{tpu_custom_call.1} parent=5 // pred_region
        // Predicated region
        $region17: #{tpu_custom_call.1} parent=15 // pred_check
          %p95 = pneg %p44
        $region18: #{tpu_custom_call.1} parent=15 // pred_check_branch
          %97 = sbr.rel (%p95) target = $region20
        $region19: #{tpu_custom_call.1} parent=15 // pred_region
          %s98 = sand.u32 %s34, 1
          %s99 = scalar_lea.sflag [#allocation3], %s98
          %s100 = sand.u32 %s34, 1
          %s101 = smul.addr %s100, 32
          %s102 = scalar_lea.vmem [#allocation2], %s101
          %s103 = smul.u32 2, %s17
          %s104 = smul.u32 2, %s18
          %s106 = ssub.s32 512, 512
          %107 = vsyncadd %s99, %s106
          %s108 = smul.addr %s103, 2
          %s109 = sadd.s32 %s104, %s108
          %s110 = smul.addr %s109, 128
          %s111 = scalar_lea.hbm %s0, %s110
          %s112 = sshll.u32 %s102, 4
          %s113 = int_to_ptr.vmem [resolvable:$true] %s112
          %118 = dma.hbm_to_vmem [thread:$0]  %s111, 512, %s113, %s99, 256, 256, 16
        $region20: #{tpu_custom_call.1} parent=15 // pred_fallthru
          _
      $region16: #{tpu_custom_call.1} parent=5 // pred_fallthru
        _
      %p119 = scmp.le.s32.totalorder 1, %s10
      %p120 = scmp.lt.s32.totalorder %s10, 4
      %p121 = pnand %p119, %p120
      %p122 = pneg %p121
      // Predicated region
      $region21: #{tpu_custom_call.1} parent=5 // pred_check
        _
      $region22: #{tpu_custom_call.1} parent=5 // pred_check_branch
        %124 = sbr.rel (%p121) target = $region24
      $region23: #{tpu_custom_call.1} parent=5 // pred_region
        %s125 = ssub.s32 %s10, 1
        %s126 = sand.u32 %s37, 1
        %s127 = scalar_lea.sflag [#allocation3], %s126
        %s128 = sand.u32 %s37, 1
        %s129 = smul.addr %s128, 32
        %s130 = scalar_lea.vmem [#allocation2], %s129
        // Predicated region
        $region25: #{tpu_custom_call.1} parent=23 // pred_check
          %p131 = pneg %p50
        $region26: #{tpu_custom_call.1} parent=23 // pred_check_branch
          %133 = sbr.rel (%p131) target = $region28
        $region27: #{tpu_custom_call.1} parent=23 // pred_region
          %134 = dma.done %s127, 512
        $region28: #{tpu_custom_call.1} parent=23 // pred_fallthru
          _
        %s135 = sand.u32 %s37, 1
        %s136 = scalar_lea.sflag [#allocation3], %s135
        %s137 = sand.u32 %s37, 1
        %s138 = smul.addr %s137, 32
        %s139 = scalar_lea.vmem [#allocation2], %s138
        %p140 = pneg %p50
        %p141 = pneg %p47
        %p142 = pneg %p76
        %p143 = pneg %p73
        %s144 = smul.u32 2, %s19
        %p145 = scmp.lt.s32.totalorder %s144, 5
        %s146 = scalar_select %p145, %s144, 5
        %s147 = smul.addr %s146, 8
        %s148 = scalar_lea.vmem %s1, %s147
        %s149 = smul.u32 2, %s19
        %s150 = smul.u32 2, %s20
        %s151 = smul.u32 2, %s19
        %p152 = scmp.lt.s32.totalorder %s151, 5
        %s153 = scalar_select %p152, %s151, 5
        %s154 = smul.addr %s153, 8
        %s155 = scalar_lea.vmem %s1, %s154
        %s156 = smul.u32 2, %s19
        %v157 = vld [vmem:[%s130] sm:$0xff]
        %v158 = vld [vmem:[%s130 + $0x8] sm:$0xff]
        %v159 = vld [vmem:[%s130 + $0x10] sm:$0xff]
        %v160 = vld [vmem:[%s130 + $0x18] sm:$0xff]
        %v161 = vadd.f32 %v157, %v158
        %162 = vadd.xlane.f32.xlu0 %v161
        %v163 = vpop.xlane.xlu0 %162
        %v164 = vadd.f32 %v159, %v160
        %165 = vadd.xlane.f32.xlu0 %v164
        %v166 = vpop.xlane.xlu0 %165
        %v167 = vmul.f32 %v163, 0.00390625
        %v168 = vmul.f32 %v166, 0.00390625
        %vm169 = vcmask 7168
        %170 = vst.msk [vmem:[%s155] sm:$0xff] %vm169, %v167
        %171 = vst.msk [vmem:[%s155 + $0x8] sm:$0xff] %vm169, %v168
        %s172 = smul.u32 2, %s19
        %p173 = scmp.lt.s32.totalorder %s172, 5
        %s174 = scalar_select %p173, %s172, 5
        %s175 = smul.addr %s174, 8
        %s176 = scalar_lea.vmem %s1, %s175
        // Predicated region
        $region29: #{tpu_custom_call.1} parent=23 // pred_check
          %p177 = pneg %p73
        $region30: #{tpu_custom_call.1} parent=23 // pred_check_branch
          %179 = sbr.rel (%p177) target = $region32
        $region31: #{tpu_custom_call.1} parent=23 // pred_region
          %s180 = smul.u32 2, %s19
        $region32: #{tpu_custom_call.1} parent=23 // pred_fallthru
          _
      $region24: #{tpu_custom_call.1} parent=5 // pred_fallthru
        _
      %p181 = scmp.le.s32.totalorder 2, %s10
      // Predicated region
      $region33: #{tpu_custom_call.1} parent=5 // pred_check
        %p182 = pneg %p181
      $region34: #{tpu_custom_call.1} parent=5 // pred_check_branch
        %184 = sbr.rel (%p182) target = $region36
      $region35: #{tpu_custom_call.1} parent=5 // pred_region
        %s185 = ssub.s32 %s10, 2
        // Predicated region
        $region37: #{tpu_custom_call.1} parent=35 // pred_check
          %p186 = pneg %p79
        $region38: #{tpu_custom_call.1} parent=35 // pred_check_branch
          %188 = sbr.rel (%p186) target = $region40
        $region39: #{tpu_custom_call.1} parent=35 // pred_region
          %s189 = smul.u32 2, %s21
          %p190 = scmp.lt.s32.totalorder %s189, 5
          %s191 = scalar_select %p190, %s189, 5
          %s192 = smul.addr %s191, 8
          %s193 = scalar_lea.vmem %s1, %s192
        $region40: #{tpu_custom_call.1} parent=35 // pred_fallthru
          _
      $region36: #{tpu_custom_call.1} parent=5 // pred_fallthru
        _
    $region6: #{tpu_custom_call.1} parent=1 // loop_footer
      %s14 = sadd.s32 1, %s10
    $region7: #{tpu_custom_call.1} parent=1 // loop_footer_branch
      %9 = sbr.rel target = $region3
    $region8: #{tpu_custom_call.1} parent=1 // loop_exit
      _
    %194 = vsyncpa [#allocation3], 1
    %s195 = scalar_lea.sflag [#allocation3], 1
    %196 = vsyncpa %s195, 1

</llo_original>
